<compile_context>
chip_gen: v6e
topology: v6e:2x2x1
jax: 0.10.0
libtpu: 0.0.40
codegen_flags: <defaults>
</compile_context>

<pallas_src>
import functools
import math

import jax
import jax.numpy as jnp
from jax.experimental import pallas as pl
from jax.experimental.pallas import tpu as pltpu


_TRIPLET_QUANTUM = 3 * 128  # flat block quantum: whole xyz triplets, 128-lane aligned


def _round_up(x, m):
    return (x + m - 1) // m * m


def _vmem_capacity_bytes():
    try:
        return int(pltpu.get_tpu_info().vmem_capacity_bytes)
    except Exception:
        return 64 * 1024 * 1024  # conservative (v7x-sized) default


def coors_norm_ref(coors, scale, eps=1e-8):
    """Pure-JAX reference mirroring the PyTorch forward."""
    norm = jnp.linalg.norm(coors, axis=-1, keepdims=True)
    return coors / jnp.maximum(norm, eps) * scale


# ---------------------------------------------------------------------------
# Primary kernel: layout-free flat triplet stream (no transposes at all).
# ---------------------------------------------------------------------------

def _coors_norm_flat_kernel(scale_ref, mid_mask_ref, x_ref, o_ref, *, eps):
    """CoorsNorm on a (1, bn) tile of flat interleaved xyz triplets.

    bn % 384 == 0, so every tile holds whole triplets and the in-tile lane
    index matches the global coordinate index mod 3.  mid_mask is 1.0 at
    triplet-middle lanes (lane % 3 == 1) and 0.0 elsewhere.
    """
    x = x_ref[...].astype(jnp.float32)                      # (1, bn)
    bn = x.shape[-1]
    x2 = x * x
    # Triplet sum of squares, valid at triplet-middle lanes p (p % 3 == 1):
    #   ss[p] = x2[p-1] + x2[p] + x2[p+1]
    # The symmetric {+1, -1} roll pair makes this independent of the roll sign
    # convention; roll wrap-around only ever lands on masked-out lanes.
    ss = x2 + pltpu.roll(x2, 1, axis=1) + pltpu.roll(x2, bn - 1, axis=1)
    # clamp(norm, eps) == sqrt(max(sumsq, eps^2)); rsqrt runs on the EUP slot
    # and the learned scale is folded into the per-point inverse factor.
    inv = jax.lax.rsqrt(jnp.maximum(ss, eps * eps)) * scale_ref[0]
    # Keep the factor only at triplet-middle lanes (a select, so stale padding
    # in a partial tail block can never leak NaNs into valid lanes), then
    # broadcast it to both neighbouring lanes with the same symmetric rolls.
    inv0 = jnp.where(mid_mask_ref[...] != 0.0, inv, 0.0)
    invb = inv0 + pltpu.roll(inv0, 1, axis=1) + pltpu.roll(inv0, bn - 1, axis=1)
    o_ref[...] = (x * invb).astype(o_ref.dtype)


def _pick_flat_block(n_flat):
    """Largest safe multiple-of-384 lane block for the flat kernel."""
    # Worst-case VMEM: a (1, bn) f32 tile pads to 8 sublanes -> 32*bn bytes per
    # buffer; double-buffered {in, out, mask} -> 192*bn bytes total.
    budget = min(_vmem_capacity_bytes() // 2, 72 * 1024 * 1024)
    bn_cap = max(
        _TRIPLET_QUANTUM,
        min(budget // 192, 2048 * _TRIPLET_QUANTUM)
        // _TRIPLET_QUANTUM * _TRIPLET_QUANTUM,
    )
    # Never exceed the array, and aim for >= 2 grid steps so both v7x
    # TensorCores participate (harmless on single-TC v5e/v6e).
    bn_fit = max(_TRIPLET_QUANTUM, n_flat // _TRIPLET_QUANTUM * _TRIPLET_QUANTUM)
    bn_half = _round_up(-(-n_flat // 2), _TRIPLET_QUANTUM)
    return min(bn_cap, bn_fit, bn_half)


def _coors_norm_flat_call(flat, scale, eps):
    """pallas_call on a (1, n) flat triplet stream (n % 3 == 0, n >= 384)."""
    n = flat.shape[-1]
    bn = _pick_flat_block(n)
    grid = (pl.cdiv(n, bn),)
    mid_mask = jnp.tile(jnp.asarray([0.0, 1.0, 0.0], dtype=jnp.float32), bn // 3)
    mid_mask = mid_mask.reshape(1, bn)
    itemsize = flat.dtype.itemsize
    vmem_limit = min(
        _vmem_capacity_bytes(),
        max(32 * 1024 * 1024, 192 * bn + 8 * 1024 * 1024),
    )
    return pl.pallas_call(
        functools.partial(_coors_norm_flat_kernel, eps=eps),
        out_shape=jax.ShapeDtypeStruct((1, n), flat.dtype),
        grid=grid,
        in_specs=[
            pl.BlockSpec(memory_space=pltpu.MemorySpace.SMEM),   # scale, (1,)
            pl.BlockSpec((1, bn), lambda i: (0, 0)),             # triplet-middle mask
            pl.BlockSpec((1, bn), lambda i: (0, i)),             # flat coords
        ],
        out_specs=pl.BlockSpec((1, bn), lambda i: (0, i)),
        compiler_params=pltpu.CompilerParams(
            dimension_semantics=("parallel",),
            vmem_limit_bytes=int(vmem_limit),
        ),
        cost_estimate=pl.CostEstimate(
            flops=10 * n,
            transcendentals=n // 3,
            bytes_accessed=2 * n * itemsize + 4 * bn + 4,
        ),
    )(scale.reshape(1).astype(jnp.float32), mid_mask, flat)


# ---------------------------------------------------------------------------
# Lane-dense (D, M) kernel: call directly if the surrounding model already
# carries coordinates as (D, M) (review item 1a); also the generic fallback.
# ---------------------------------------------------------------------------

def _coors_norm_lane_dense_kernel(scale_ref, x_ref, o_ref, *, eps):
    x = x_ref[...].astype(jnp.float32)                      # (D, bn)
    ss = jnp.sum(x * x, axis=0, keepdims=True)              # (1, bn)
    inv = jax.lax.rsqrt(jnp.maximum(ss, eps * eps)) * scale_ref[0]
    o_ref[...] = (x * inv).astype(o_ref.dtype)


def _pick_lane_block(m):
    budget = min(_vmem_capacity_bytes() // 2, 72 * 1024 * 1024)
    bn_cap = max(128, min(budget // 128, 262144) // 128 * 128)
    if m <= 256:
        return m                      # single full-extent block (always legal)
    bn_fit = m // 128 * 128           # keep the lane dim 128-aligned
    bn_half = _round_up(-(-m // 2), 128)
    return max(128, min(bn_cap, bn_fit, bn_half))


def coors_norm_lane_dense(xt, scale, *, eps=1e-8):
    """CoorsNorm on an already lane-dense (D, M) coordinate layout.

    If the surrounding model carries coordinates transposed as (D, M), call
    this directly: no transpose or relayout is ever issued.
    """
    D, m = xt.shape
    bn = _pick_lane_block(m)
    grid = (pl.cdiv(m, bn),)
    itemsize = xt.dtype.itemsize
    vmem_limit = min(
        _vmem_capacity_bytes(),
        max(32 * 1024 * 1024, 128 * bn + 8 * 1024 * 1024),
    )
    return pl.pallas_call(
        functools.partial(_coors_norm_lane_dense_kernel, eps=eps),
        out_shape=jax.ShapeDtypeStruct((D, m), xt.dtype),
        grid=grid,
        in_specs=[
            pl.BlockSpec(memory_space=pltpu.MemorySpace.SMEM),   # scale, (1,)
            pl.BlockSpec((D, bn), lambda i: (0, i)),
        ],
        out_specs=pl.BlockSpec((D, bn), lambda i: (0, i)),
        compiler_params=pltpu.CompilerParams(
            dimension_semantics=("parallel",),
            vmem_limit_bytes=int(vmem_limit),
        ),
        cost_estimate=pl.CostEstimate(
            flops=8 * m * D,
            transcendentals=m,
            bytes_accessed=2 * m * D * itemsize,
        ),
    )(scale.reshape(1).astype(jnp.float32), xt)


# ---------------------------------------------------------------------------
# Public wrapper on the natural (..., 3) layout.
# ---------------------------------------------------------------------------

_FLAT_PATH_OK = None


def _flat_path_available():
    """One-time probe: compile and numerically validate the flat roll kernel."""
    global _FLAT_PATH_OK
    if _FLAT_PATH_OK is None:
        try:
            pts = (jnp.arange(640 * 3, dtype=jnp.float32).reshape(640, 3)
                   - 400.0) / 97.0
            one = jnp.ones((1,), jnp.float32)
            got = _coors_norm_flat_call(pts.reshape(1, -1), one, 1e-8)
            got = jax.block_until_ready(got).reshape(640, 3)
            want = coors_norm_ref(pts, one, 1e-8)
            _FLAT_PATH_OK = bool(jnp.allclose(got, want, atol=1e-5, rtol=1e-4))
        except Exception:
            _FLAT_PATH_OK = False
    return _FLAT_PATH_OK


def coors_norm(coors, scale, *, eps=1e-8):
    """Pallas implementation of CoorsNorm.forward for (..., D) coordinates."""
    orig_shape = coors.shape
    D = orig_shape[-1]
    m = math.prod(orig_shape[:-1]) if len(orig_shape) > 1 else 1
    n = m * D

    # Primary: layout-free flat kernel -- no transposes, minimal HBM traffic.
    # (Tiny inputs and D != 3 take the generic lane-dense path instead.)
    if D == 3 and n >= _TRIPLET_QUANTUM and _flat_path_available():
        flat = coors.reshape(1, n)                      # free, row-major view
        out = _coors_norm_flat_call(flat, scale, eps)
        return out.reshape(orig_shape)

    # Fallback: lane-dense (D, M) kernel behind an XLA transpose.
    # TODO(synk): in a real model, carry the (D, M) layout through the
    # surrounding ops and call coors_norm_lane_dense directly instead.
    xt = jnp.transpose(coors.reshape(m, D))             # (D, M)
    out_t = coors_norm_lane_dense(xt, scale, eps=eps)
    return jnp.transpose(out_t).reshape(orig_shape)


if __name__ == "__main__":
    key = jax.random.PRNGKey(0)
    k1, k2 = jax.random.split(key)

    # Case 1: small (batch, nodes, xyz) tensor, module defaults (scale_init=1).
    # n = 48 < 384, so this exercises the generic lane-dense fallback path.
    coors1 = jax.random.normal(k1, (2, 8, 3), dtype=jnp.float32)
    scale1 = jnp.full((1,), 1.0, dtype=jnp.float32)
    out1 = jax.block_until_ready(coors_norm(coors1, scale1, eps=1e-8))
    ref1 = coors_norm_ref(coors1, scale1, eps=1e-8)
    assert out1.shape == coors1.shape and out1.dtype == coors1.dtype
    assert jnp.allclose(out1, ref1, atol=1e-5, rtol=1e-4), "mismatch (case 1)"

    # Case 2: larger tensor with a non-unit scale; exercises the layout-free
    # flat kernel with >= 2 grid steps and a partial (masked) tail block.
    coors2 = jax.random.normal(k2, (4, 300, 3), dtype=jnp.float32)
    scale2 = jnp.full((1,), 0.5, dtype=jnp.float32)
    out2 = jax.block_until_ready(coors_norm(coors2, scale2, eps=1e-8))
    ref2 = coors_norm_ref(coors2, scale2, eps=1e-8)
    assert jnp.allclose(out2, ref2, atol=1e-5, rtol=1e-4), "mismatch (case 2)"

    # Case 3: the lane-dense entry point on an already (D, M)-transposed input
    # (review item 1a: upstream layout fusion removes all relayout).
    xt = jnp.transpose(coors2.reshape(-1, 3))           # (3, 1200)
    out3 = jax.block_until_ready(coors_norm_lane_dense(xt, scale2, eps=1e-8))
    ref3 = jnp.transpose(coors_norm_ref(coors2, scale2, eps=1e-8).reshape(-1, 3))
    assert jnp.allclose(out3, ref3, atol=1e-5, rtol=1e-4), "mismatch (case 3)"

    print("KERNEL_OK")
</pallas_src>

<mosaic_0001>
module attributes {stable_mosaic.version = 11 : i64} {
  func.func @_coors_norm_lane_dense_kernel(%arg0: i32, %arg1: memref<1xf32, #tpu.memory_space<smem>>, %arg2: memref<3x16xf32, #tpu.memory_space<vmem>>, %arg3: memref<3x16xf32, #tpu.memory_space<vmem>>) attributes {dimension_semantics = [#tpu.dimension_semantics<parallel>], iteration_bounds = array<i64: 1>, scalar_prefetch = 0 : i64, scratch_operands = 0 : i64, tpu.core_type = #tpu.core_type<tc>, window_params = [{transform_indices = @transform_0, window_bounds = array<i64: 1>}, {transform_indices = @transform_1, window_bounds = array<i64: 3, 16>}, {transform_indices = @transform_2, window_bounds = array<i64: 3, 16>}]} {
    %c0 = arith.constant 0 : index
    %c0_0 = arith.constant 0 : index
    %0 = vector.load %arg2[%c0, %c0_0] : memref<3x16xf32, #tpu.memory_space<vmem>>, vector<3x16xf32>
    %1 = arith.mulf %0, %0 : vector<3x16xf32>
    %cst = arith.constant dense<0.000000e+00> : vector<16xf32>
    %2 = vector.multi_reduction <add>, %1, %cst [0] : vector<3x16xf32> to vector<16xf32>
    %3 = vector.shape_cast %2 : vector<16xf32> to vector<1x16xf32>
    %cst_1 = arith.constant 1.000000e-16 : f32
    %4 = vector.broadcast %cst_1 : f32 to vector<1x16xf32>
    %5 = arith.maximumf %3, %4 : vector<1x16xf32>
    %6 = math.rsqrt %5 : vector<1x16xf32>
    %c0_2 = arith.constant 0 : index
    %7 = memref.load %arg1[%c0_2] : memref<1xf32, #tpu.memory_space<smem>>
    %8 = vector.broadcast %7 : f32 to vector<1x16xf32>
    %9 = arith.mulf %6, %8 : vector<1x16xf32>
    %10 = vector.broadcast %9 : vector<1x16xf32> to vector<3x16xf32>
    %11 = arith.mulf %0, %10 : vector<3x16xf32>
    %c0_3 = arith.constant 0 : index
    %c0_4 = arith.constant 0 : index
    %12 = vector.load %arg3[%c0_3, %c0_4] : memref<3x16xf32, #tpu.memory_space<vmem>>, vector<3x16xf32>
    tpu.vector_store %arg3[%c0_3, %c0_4], %11 {strides = array<i32>} : memref<3x16xf32, #tpu.memory_space<vmem>>, vector<3x16xf32>,
    return
  }
  func.func @transform_0(%arg0: i32) -> i32 {
    %c0_i32 = arith.constant 0 : i32
    %c0_i32_0 = arith.constant 0 : i32
    return %c0_i32 : i32
  }
  func.func @transform_1(%arg0: i32) -> (i32, i32) {
    %c0_i32 = arith.constant 0 : i32
    %c0_i32_0 = arith.constant 0 : i32
    return %c0_i32, %arg0 : i32, i32
  }
  func.func @transform_2(%arg0: i32) -> (i32, i32) {
    %c0_i32 = arith.constant 0 : i32
    %c0_i32_0 = arith.constant 0 : i32
    return %c0_i32, %arg0 : i32, i32
  }
}

</mosaic_0001>

<llo_original>
// kernel: tpu_custom_call.1
$region0: #{tpu_custom_call.1}
  #allocation0 [shape = 'u32[]', space=smem, size = 0x4, offset = 0x4, fixed_abs, tag = 'smem constant byte address 0x4 - core index']
  #allocation1 [shape = 'u32[144,128]{1,0:T(1,128)}', space=vmem, size = 0x12000, scoped, tag = 'internal scratch']
  #allocation2 [shape = 'f32[1]{0:T(128)S(6)}', space=smem, size = 0x200, scoped, tag = 'scoped memory for tpu_custom_call.1']
  %s0 = inlined_call_operand.<no memory space> [shape: f32[1], index: 0, kind: input, shape index: {}]
  %s1 = inlined_call_operand.hbm [shape: f32[3,16], index: 1, kind: input, shape index: {}]
  %s2 = inlined_call_operand.hbm [shape: f32[3,16], index: 2, kind: output, shape index: {}]
  %s3 = sld [smem:[#allocation0]]
  $region22: #{tpu_custom_call.1} parent=0
    _
  %s5 = ssub.s32 1, %s3
  %s6 = scalar_select 0, %s5, %s3
  %7 = sst [smem:[#allocation2]] %s0
  $region1: #{tpu_custom_call.1} parent=0
    #allocation3 [shape = 'u8[2048]{0}', space=vmem, size = 0x800, scoped, tag = 'input window, operand 1, single buffered']
    #allocation4 [shape = 's32[1]{0}', space=sflag, size = 0x4, scoped, tag = 'scoped memory for tpu_custom_call.1']
    #allocation5 [shape = 's32[1]{0}', space=sflag, size = 0x4, scoped, tag = 'scoped memory for tpu_custom_call.1']
    #allocation6 [shape = 'u8[2048]{0}', space=vmem, size = 0x800, scoped, tag = 'output window, operand 0, single buffered']
    %8 = vsyncpa [#allocation4], 0
    %9 = vsyncpa [#allocation5], 0
    // Predicated region
    $region2: #{tpu_custom_call.1} parent=1 // pred_check
      _
    $region3: #{tpu_custom_call.1} parent=1 // pred_check_branch
      %11 = sbr.rel (0) target = $region5
    $region4: #{tpu_custom_call.1} parent=1 // pred_region
      _
    $region5: #{tpu_custom_call.1} parent=1 // pred_fallthru
      _
    // Predicated region
    $region6: #{tpu_custom_call.1} parent=1 // pred_check
      _
    $region7: #{tpu_custom_call.1} parent=1 // pred_check_branch
      %13 = sbr.rel (0) target = $region9
    $region8: #{tpu_custom_call.1} parent=1 // pred_region
      %s15 = ssub.s32 64, 64
      %16 = vsyncadd [#allocation4], %s15
      %s18 = sshll.u32 [#allocation3], 4
      %s19 = int_to_ptr.vmem [resolvable:$true] %s18
      %21 = dma.hbm_to_vmem [thread:$0]  %s1, 64, %s19, [#allocation4]
    $region9: #{tpu_custom_call.1} parent=1 // pred_fallthru
      _
    // Predicated region
    $region10: #{tpu_custom_call.1} parent=1 // pred_check
      _
    $region11: #{tpu_custom_call.1} parent=1 // pred_check_branch
      %23 = sbr.rel (0) target = $region13
    $region12: #{tpu_custom_call.1} parent=1 // pred_region
      %24 = dma.done [#allocation4], 64
    $region13: #{tpu_custom_call.1} parent=1 // pred_fallthru
      _
    %v25 = vld [vmem:[#allocation3] sm:$0x7]
    %v26 = vmul.f32 %v25, %v25
    %vm27 = vcmask 124928
    %v28 = vsel %vm27, %v26, 0.0
    %v29 = vrot.slane %v28, 4
    %v30 = vadd.f32 %v28, %v29
    %v31 = vrot.slane %v30, 2
    %v32 = vadd.f32 %v30, %v31
    %v33 = vrot.slane %v32, 1
    %v34 = vadd.f32 %v32, %v33
    %v35 = vmax.f32 %v34, 1e-16
    %v36 = vrsqrt.pop %v35
    %s37 = sld [smem:[#allocation2]]
    %v38 = vstv %s37
    %v39 = vmul.f32 %v36, %v38
    %v40 = vmul.f32 %v25, %v39
    %41 = vst.msk [vmem:[#allocation6] sm:$0x7] %vm27, %v40
    // Predicated region
    $region14: #{tpu_custom_call.1} parent=1 // pred_check
      _
    $region15: #{tpu_custom_call.1} parent=1 // pred_check_branch
      %43 = sbr.rel (0) target = $region17
    $region16: #{tpu_custom_call.1} parent=1 // pred_region
      %s45 = ssub.s32 64, 64
      %46 = vsyncadd [#allocation5], %s45
      %s48 = sshll.u32 [#allocation6], 4
      %s49 = int_to_ptr.vmem [resolvable:$true] %s48
      %51 = dma.vmem_to_hbm [thread:$0]  %s49, 64, %s2, [#allocation5]
    $region17: #{tpu_custom_call.1} parent=1 // pred_fallthru
      _
    // Predicated region
    $region18: #{tpu_custom_call.1} parent=1 // pred_check
      _
    $region19: #{tpu_custom_call.1} parent=1 // pred_check_branch
      %53 = sbr.rel (0) target = $region21
    $region20: #{tpu_custom_call.1} parent=1 // pred_region
      %54 = dma.done [#allocation5], 64
    $region21: #{tpu_custom_call.1} parent=1 // pred_fallthru
      _
    %55 = vsyncpa [#allocation4], 1
    %56 = vsyncpa [#allocation5], 1

</llo_original>
